<compile_context>
chip_gen: v6e
topology: v6e:2x2x1
jax: 0.10.0
libtpu: 0.0.40
codegen_flags: <defaults>
</compile_context>

<pallas_src>
import jax
import jax.numpy as jnp
import numpy as np
from jax.experimental import pallas as pl
from jax.experimental.pallas import tpu as pltpu


# --------------------------------------------------------------------------- #
# Kernels
# --------------------------------------------------------------------------- #

def _ffn_kernel_resident(x_ref, w13t_ref, w2t_ref, o_ref):
    """Weight-resident path: full (padded) d_ff per step, fused gate/up dot.

    x_ref:    (tm, d_model)
    w13t_ref: (d_model, 2*dffp)  packed [W1.T | W3.T]
    w2t_ref:  (dffp, d_model)
    o_ref:    (tm, d_model)
    """
    dffp = w2t_ref.shape[0]
    x = x_ref[...]
    # One MXU pass of x against the fused RHS instead of two.
    h = jnp.dot(x, w13t_ref[...], preferred_element_type=jnp.float32)
    h1 = h[:, :dffp]            # lane-aligned split (dffp is a multiple of 128)
    h3 = h[:, dffp:]
    gated = h1 * jax.nn.sigmoid(h1) * h3          # silu(h1) * h3, f32
    o_ref[...] = jnp.dot(gated.astype(w2t_ref.dtype), w2t_ref[...],
                         preferred_element_type=jnp.float32).astype(o_ref.dtype)


def _ffn_kernel_streamed_f32out(x_ref, w1t_ref, w3t_ref, w2t_ref, o_ref):
    """Streamed path, f32 output: accumulate directly into the resident o_ref."""
    f = pl.program_id(1)
    x = x_ref[...]
    h1 = jnp.dot(x, w1t_ref[...], preferred_element_type=jnp.float32)
    h3 = jnp.dot(x, w3t_ref[...], preferred_element_type=jnp.float32)
    gated = h1 * jax.nn.sigmoid(h1) * h3
    partial = jnp.dot(gated.astype(w2t_ref.dtype), w2t_ref[...],
                      preferred_element_type=jnp.float32)

    @pl.when(f == 0)
    def _():
        o_ref[...] = partial

    @pl.when(f > 0)
    def _():
        o_ref[...] += partial


def _ffn_kernel_streamed_acc(x_ref, w1t_ref, w3t_ref, w2t_ref, o_ref, acc_ref):
    """Streamed path, non-f32 output: f32 scratch accumulator, fused final store."""
    f = pl.program_id(1)
    last = pl.num_programs(1) - 1
    x = x_ref[...]
    h1 = jnp.dot(x, w1t_ref[...], preferred_element_type=jnp.float32)
    h3 = jnp.dot(x, w3t_ref[...], preferred_element_type=jnp.float32)
    gated = h1 * jax.nn.sigmoid(h1) * h3
    partial = jnp.dot(gated.astype(w2t_ref.dtype), w2t_ref[...],
                      preferred_element_type=jnp.float32)

    @pl.when(f == 0)
    def _():
        acc_ref[...] = jnp.zeros_like(acc_ref)

    @pl.when(f != last)
    def _():
        acc_ref[...] += partial

    @pl.when(f == last)
    def _():
        # Fused final store: no separate acc -> o_ref full-tile copy.
        o_ref[...] = (acc_ref[...] + partial).astype(o_ref.dtype)


# --------------------------------------------------------------------------- #
# Wrapper helpers
# --------------------------------------------------------------------------- #

def _round_up(a, b):
    return (a + b - 1) // b * b


def _vmem_budget():
    """(block_budget_bytes, vmem_limit_bytes), generation-aware."""
    try:
        cap = int(pltpu.get_tpu_info().vmem_capacity_bytes)
    except Exception:
        cap = 64 << 20                       # conservative fallback = v7x per-core VMEM
    vmem_limit = min(int(cap * 0.85), cap - (4 << 20))   # headroom for Mosaic scratch
    block_budget = int(cap * 0.70)
    return block_budget, vmem_limit


def _pick_tm(n, tm_target, row_align):
    tm = min(tm_target, _round_up(n, row_align))
    tm = max(row_align, _round_up(tm, row_align))
    # Ensure >= 2 token tiles when there is enough work so the "parallel" axis
    # can actually feed both TensorCores (v7x megacore).
    if _round_up(n, tm) // tm < 2 and n > row_align:
        tm = _round_up((n + 1) // 2, row_align)
    return tm


def _resident_vmem_bytes(tm, d_model, dffp, xsz, wsz, osz):
    return (2 * tm * d_model * xsz                # x blocks (double-buffered)
            + 2 * tm * d_model * osz              # out blocks
            + 2 * 3 * d_model * dffp * wsz        # w13t (2*dffp) + w2t (dffp), x2 buffers
            + 3 * tm * dffp * 4)                  # h / gated f32 intermediates


def _streamed_vmem_bytes(tm, tf, d_model, xsz, wsz, osz, use_scratch):
    return (2 * tm * d_model * xsz
            + 2 * tm * d_model * osz
            + (tm * d_model * 4 if use_scratch else 0)
            + 2 * 3 * d_model * tf * wsz          # w1/w3/w2 blocks, double-buffered
            + 3 * tm * tf * 4)                    # h1/h3/gated f32 intermediates


def _pick_tf(dffp, tm, d_model, xsz, wsz, osz, use_scratch, budget, force_tf=None):
    if force_tf is not None:
        assert dffp % force_tf == 0 and force_tf % 128 == 0
        return force_tf
    # Largest multiple of 128 that divides dffp and fits the VMEM block budget.
    for tf in range(dffp, 0, -128):
        if dffp % tf == 0 and _streamed_vmem_bytes(
                tm, tf, d_model, xsz, wsz, osz, use_scratch) <= budget:
            return tf
    # TODO(synk): for extreme d_model even tf=128 may not fit; tiling the
    # d_model axis of the down-projection would be needed there.
    return 128


# --------------------------------------------------------------------------- #
# Public API
# --------------------------------------------------------------------------- #

def prepare_ffn_weights(w1, w2, w3, compute_dtype=None):
    """ONE-TIME weight preparation (do this at parameter init, not per call).

      w1: (d_ff, d_model), w2: (d_model, d_ff), w3: (d_ff, d_model)
    Returns:
      w13t: (d_model, 2*dffp) = [W1.T | W3.T],  dffp = round_up(d_ff, 128)
      w2t:  (dffp, d_model)
    Zero-padded d_ff columns contribute exactly 0 (silu(0)*0 = 0, padded W2.T
    rows are 0), so results are unchanged.  compute_dtype=jnp.bfloat16 halves
    weight HBM traffic; accumulation inside the kernel stays f32.
    """
    d_ff, d_model = w1.shape
    dffp = _round_up(d_ff, 128)
    w1t, w3t, w2t = w1.T, w3.T, w2.T
    if dffp != d_ff:
        w1t = jnp.pad(w1t, ((0, 0), (0, dffp - d_ff)))
        w3t = jnp.pad(w3t, ((0, 0), (0, dffp - d_ff)))
        w2t = jnp.pad(w2t, ((0, dffp - d_ff), (0, 0)))
    w13t = jnp.concatenate([w1t, w3t], axis=1)
    if compute_dtype is not None:
        w13t = w13t.astype(compute_dtype)
        w2t = w2t.astype(compute_dtype)
    return w13t, w2t


def positionwise_feed_forward_prepared(x, w13t, w2t, *, tm_target=None,
                                       _force_streamed=False, _force_tf=None):
    """x: (..., d_model); (w13t, w2t) from prepare_ffn_weights()."""
    d_model = x.shape[-1]
    dffp = w2t.shape[0]
    assert w13t.shape == (d_model, 2 * dffp), (w13t.shape, d_model, dffp)

    lead = x.shape[:-1]
    out_dtype = x.dtype
    compute_dtype = w13t.dtype

    x2d = x.reshape(-1, d_model)
    if x2d.dtype != compute_dtype:
        x2d = x2d.astype(compute_dtype)
    n = x2d.shape[0]

    xsz = jnp.dtype(compute_dtype).itemsize
    wsz = xsz
    osz = jnp.dtype(out_dtype).itemsize
    row_align = 16 if xsz == 2 else 8

    block_budget, vmem_limit = _vmem_budget()

    def cparams(sem):
        return pltpu.CompilerParams(dimension_semantics=sem,
                                    vmem_limit_bytes=vmem_limit)

    flops = 6 * n * d_model * dffp
    transcendentals = n * dffp
    weight_bytes = int((w13t.size + w2t.size) * wsz)
    io_bytes = int(n * d_model * (xsz + osz))

    # ------------------ weight-resident fast path ------------------ #
    tm_res = _pick_tm(n, tm_target or 256, row_align)
    resident_fits = (_resident_vmem_bytes(tm_res, d_model, dffp, xsz, wsz, osz)
                     <= block_budget)
    if resident_fits and not _force_streamed:
        tm_eff = tm_res
        n_pad = _round_up(n, tm_eff)
        xp = jnp.pad(x2d, ((0, n_pad - n), (0, 0))) if n_pad != n else x2d
        cost = pl.CostEstimate(flops=flops, transcendentals=transcendentals,
                               bytes_accessed=io_bytes + weight_bytes)
        out2d = pl.pallas_call(
            _ffn_kernel_resident,
            out_shape=jax.ShapeDtypeStruct((n_pad, d_model), out_dtype),
            grid_spec=pltpu.PrefetchScalarGridSpec(
                num_scalar_prefetch=0,
                grid=(n_pad // tm_eff,),
                in_specs=[
                    pl.BlockSpec((tm_eff, d_model), lambda i: (i, 0)),
                    # Constant index maps -> weights stay VMEM-resident across
                    # all token tiles (fetched from HBM exactly once).
                    pl.BlockSpec((d_model, 2 * dffp), lambda i: (0, 0)),
                    pl.BlockSpec((dffp, d_model), lambda i: (0, 0)),
                ],
                out_specs=pl.BlockSpec((tm_eff, d_model), lambda i: (i, 0)),
            ),
            compiler_params=cparams(("parallel",)),
            cost_estimate=cost,
        )(xp, w13t, w2t)
        return out2d[:n].reshape(*lead, d_model)

    # ------------- streamed fallback (weights tiled along d_ff) ------------- #
    tm_eff = _pick_tm(n, tm_target or 512, row_align)
    use_scratch = jnp.dtype(out_dtype) != jnp.dtype(jnp.float32)
    tf_eff = _pick_tf(dffp, tm_eff, d_model, xsz, wsz, osz, use_scratch,
                      block_budget, _force_tf)
    nf = dffp // tf_eff
    n_pad = _round_up(n, tm_eff)
    xp = jnp.pad(x2d, ((0, n_pad - n), (0, 0))) if n_pad != n else x2d
    n_tiles = n_pad // tm_eff
    cost = pl.CostEstimate(flops=flops, transcendentals=transcendentals,
                           bytes_accessed=io_bytes + weight_bytes * n_tiles)

    kernel = _ffn_kernel_streamed_acc if use_scratch else _ffn_kernel_streamed_f32out
    scratch = [pltpu.VMEM((tm_eff, d_model), jnp.float32)] if use_scratch else []

    # The packed w13t array is passed twice (W1 half / W3 half) so the streamed
    # path needs no extra per-call weight copies.
    # TODO(synk): sweep pipeline_mode=pl.Buffered(3) on the weight specs on v6e
    # once bf16 frees VMEM headroom (keep Buffered(2) on v7x).
    out2d = pl.pallas_call(
        kernel,
        out_shape=jax.ShapeDtypeStruct((n_pad, d_model), out_dtype),
        grid_spec=pltpu.PrefetchScalarGridSpec(
            num_scalar_prefetch=0,
            grid=(n_tiles, nf),
            in_specs=[
                pl.BlockSpec((tm_eff, d_model), lambda i, f: (i, 0)),
                pl.BlockSpec((d_model, tf_eff), lambda i, f: (0, f)),        # W1.T tile
                pl.BlockSpec((d_model, tf_eff), lambda i, f: (0, nf + f)),   # W3.T tile
                pl.BlockSpec((tf_eff, d_model), lambda i, f: (f, 0)),        # W2.T tile
            ],
            out_specs=pl.BlockSpec((tm_eff, d_model), lambda i, f: (i, 0)),
            scratch_shapes=scratch,
        ),
        compiler_params=cparams(("parallel", "arbitrary")),
        cost_estimate=cost,
    )(xp, w13t, w13t, w2t)
    return out2d[:n].reshape(*lead, d_model)


def positionwise_feed_forward(x, w1, w2, w3, *, compute_dtype=None, tm_target=None):
    """Convenience wrapper matching the PyTorch module.  NOTE: in a real model,
    call prepare_ffn_weights() once at init and reuse the prepared weights."""
    w13t, w2t = prepare_ffn_weights(w1, w2, w3, compute_dtype=compute_dtype)
    return positionwise_feed_forward_prepared(x, w13t, w2t, tm_target=tm_target)


# --------------------------------------------------------------------------- #
# Reference + test
# --------------------------------------------------------------------------- #

def _trunc_normal(key, shape, in_features, out_features, dtype=jnp.float32):
    """Matches Linear._init_weights: trunc normal, std=sqrt(2/(in+out)), ±3σ."""
    std = np.sqrt(2.0 / (in_features + out_features))
    return (jax.random.truncated_normal(key, -3.0, 3.0, shape, dtype) * std).astype(dtype)


def _reference(x, w1, w2, w3):
    h1 = x @ w1.T
    h3 = x @ w3.T
    return ((h1 * jax.nn.sigmoid(h1)) * h3) @ w2.T


if __name__ == "__main__":
    d_model, d_ff = 32, 64
    batch, seq = 2, 8

    key = jax.random.PRNGKey(0)
    kx, k1, k2, k3 = jax.random.split(key, 4)

    x = jax.random.normal(kx, (batch, seq, d_model), dtype=jnp.float32)
    w1 = _trunc_normal(k1, (d_ff, d_model), d_model, d_ff)   # W1: (d_ff, d_model)
    w2 = _trunc_normal(k2, (d_model, d_ff), d_ff, d_model)   # W2: (d_model, d_ff)
    w3 = _trunc_normal(k3, (d_ff, d_model), d_model, d_ff)   # W3: (d_ff, d_model)
    ref = _reference(x, w1, w2, w3)

    # 1) f32 weights, weight-resident path.
    w13t_f32, w2t_f32 = prepare_ffn_weights(w1, w2, w3)            # prep ONCE
    out = jax.block_until_ready(
        positionwise_feed_forward_prepared(x, w13t_f32, w2t_f32))
    np.testing.assert_allclose(np.asarray(out), np.asarray(ref), rtol=1e-5, atol=1e-5)

    # 2) Token-padding path (n not a multiple of the tile).
    x_odd = jax.random.normal(kx, (batch, 7, d_model), dtype=jnp.float32)
    out_odd = jax.block_until_ready(
        positionwise_feed_forward_prepared(x_odd, w13t_f32, w2t_f32))
    np.testing.assert_allclose(np.asarray(out_odd),
                               np.asarray(_reference(x_odd, w1, w2, w3)),
                               rtol=1e-5, atol=1e-5)

    # 3) bf16 compute path (production mode: half the weight HBM bytes, f32 acc).
    w13t_b16, w2t_b16 = prepare_ffn_weights(w1, w2, w3, compute_dtype=jnp.bfloat16)
    out_b16 = jax.block_until_ready(
        positionwise_feed_forward_prepared(x, w13t_b16, w2t_b16))
    np.testing.assert_allclose(np.asarray(out_b16), np.asarray(ref),
                               rtol=1e-1, atol=1e-1)

    # 4) Streamed fallback (forced): non-128-multiple d_ff, d_ff tiled with nf=2.
    d_ff2 = 200
    w1b = _trunc_normal(k1, (d_ff2, d_model), d_model, d_ff2)
    w2b = _trunc_normal(k2, (d_model, d_ff2), d_ff2, d_model)
    w3b = _trunc_normal(k3, (d_ff2, d_model), d_model, d_ff2)
    refb = _reference(x, w1b, w2b, w3b)
    w13tb, w2tb = prepare_ffn_weights(w1b, w2b, w3b)
    out_s = jax.block_until_ready(
        positionwise_feed_forward_prepared(x, w13tb, w2tb,
                                           _force_streamed=True, _force_tf=128))
    np.testing.assert_allclose(np.asarray(out_s), np.asarray(refb),
                               rtol=1e-5, atol=1e-5)

    # Streamed + bf16 input/output -> exercises the scratch-accumulator kernel.
    w13tb16, w2tb16 = prepare_ffn_weights(w1b, w2b, w3b, compute_dtype=jnp.bfloat16)
    out_sb = jax.block_until_ready(
        positionwise_feed_forward_prepared(x.astype(jnp.bfloat16), w13tb16, w2tb16,
                                           _force_streamed=True, _force_tf=128))
    np.testing.assert_allclose(np.asarray(out_sb, dtype=np.float32),
                               np.asarray(refb), rtol=1.5e-1, atol=1.5e-1)

    # 5) Convenience wrapper matching the PyTorch module call signature.
    out_conv = jax.block_until_ready(positionwise_feed_forward(x, w1, w2, w3))
    np.testing.assert_allclose(np.asarray(out_conv), np.asarray(ref),
                               rtol=1e-5, atol=1e-5)

    print("KERNEL_OK")
</pallas_src>

<mosaic_0001>
module attributes {stable_mosaic.version = 11 : i64} {
  func.func @_ffn_kernel_resident(%arg0: i32, %arg1: memref<8x32xf32, #tpu.memory_space<vmem>>, %arg2: memref<32x256xf32, #tpu.memory_space<vmem>>, %arg3: memref<128x32xf32, #tpu.memory_space<vmem>>, %arg4: memref<8x32xf32, #tpu.memory_space<vmem>>) attributes {dimension_semantics = [#tpu.dimension_semantics<parallel>], iteration_bounds = array<i64: 2>, scalar_prefetch = 0 : i64, scratch_operands = 0 : i64, tpu.core_type = #tpu.core_type<tc>, window_params = [{transform_indices = @transform_0, window_bounds = array<i64: 8, 32>}, {pipeline_mode = #tpu.pipeline_mode<synchronous>, transform_indices = @transform_1, window_bounds = array<i64: 32, 256>}, {pipeline_mode = #tpu.pipeline_mode<synchronous>, transform_indices = @transform_2, window_bounds = array<i64: 128, 32>}, {transform_indices = @transform_3, window_bounds = array<i64: 8, 32>}]} {
    %c0 = arith.constant 0 : index
    %c0_0 = arith.constant 0 : index
    %0 = vector.load %arg1[%c0, %c0_0] : memref<8x32xf32, #tpu.memory_space<vmem>>, vector<8x32xf32>
    %c0_1 = arith.constant 0 : index
    %c0_2 = arith.constant 0 : index
    %1 = vector.load %arg2[%c0_1, %c0_2] : memref<32x256xf32, #tpu.memory_space<vmem>>, vector<32x256xf32>
    %cst = arith.constant dense<0.000000e+00> : vector<8x256xf32>
    %2 = tpu.matmul %0, %1, %cst {dimension_numbers = #tpu.dot_dimension_numbers<[1], [0], [0], [1], [0, 0, 1, 1], [], []>} : vector<8x32xf32>, vector<32x256xf32>, vector<8x256xf32> -> vector<8x256xf32>
    %3 = vector.extract_strided_slice %2 {offsets = [0, 0], sizes = [8, 128], strides = [1, 1]} : vector<8x256xf32> to vector<8x128xf32>
    %4 = vector.extract_strided_slice %2 {offsets = [0, 128], sizes = [8, 128], strides = [1, 1]} : vector<8x256xf32> to vector<8x128xf32>
    %5 = arith.negf %3 : vector<8x128xf32>
    %6 = math.exp %5 : vector<8x128xf32>
    %cst_3 = arith.constant 1.000000e+00 : f32
    %7 = vector.broadcast %cst_3 : f32 to vector<8x128xf32>
    %8 = arith.addf %7, %6 : vector<8x128xf32>
    %9 = arith.divf %7, %8 : vector<8x128xf32>
    %10 = arith.mulf %3, %9 : vector<8x128xf32>
    %11 = arith.mulf %10, %4 : vector<8x128xf32>
    %c0_4 = arith.constant 0 : index
    %c0_5 = arith.constant 0 : index
    %12 = vector.load %arg3[%c0_4, %c0_5] : memref<128x32xf32, #tpu.memory_space<vmem>>, vector<128x32xf32>
    %cst_6 = arith.constant dense<0.000000e+00> : vector<8x32xf32>
    %13 = tpu.matmul %11, %12, %cst_6 {dimension_numbers = #tpu.dot_dimension_numbers<[1], [0], [0], [1], [0, 0, 1, 1], [], []>} : vector<8x128xf32>, vector<128x32xf32>, vector<8x32xf32> -> vector<8x32xf32>
    %c0_7 = arith.constant 0 : index
    %c0_8 = arith.constant 0 : index
    %14 = vector.load %arg4[%c0_7, %c0_8] : memref<8x32xf32, #tpu.memory_space<vmem>>, vector<8x32xf32>
    tpu.vector_store %arg4[%c0_7, %c0_8], %13 {strides = array<i32>} : memref<8x32xf32, #tpu.memory_space<vmem>>, vector<8x32xf32>,
    return
  }
  func.func @transform_0(%arg0: i32) -> (i32, i32) {
    %c0_i32 = arith.constant 0 : i32
    %c0_i32_0 = arith.constant 0 : i32
    return %arg0, %c0_i32 : i32, i32
  }
  func.func @transform_1(%arg0: i32) -> (i32, i32) {
    %c0_i32 = arith.constant 0 : i32
    %c0_i32_0 = arith.constant 0 : i32
    %c0_i32_1 = arith.constant 0 : i32
    return %c0_i32, %c0_i32_0 : i32, i32
  }
  func.func @transform_2(%arg0: i32) -> (i32, i32) {
    %c0_i32 = arith.constant 0 : i32
    %c0_i32_0 = arith.constant 0 : i32
    %c0_i32_1 = arith.constant 0 : i32
    return %c0_i32, %c0_i32_0 : i32, i32
  }
  func.func @transform_3(%arg0: i32) -> (i32, i32) {
    %c0_i32 = arith.constant 0 : i32
    %c0_i32_0 = arith.constant 0 : i32
    return %arg0, %c0_i32 : i32, i32
  }
}

</mosaic_0001>

<llo_original>
// kernel: tpu_custom_call.1
$region0: #{tpu_custom_call.1}
  #allocation0 [shape = 'u32[]', space=smem, size = 0x4, offset = 0x4, fixed_abs, tag = 'smem constant byte address 0x4 - core index']
  #allocation1 [shape = 'u32[144,128]{1,0:T(1,128)}', space=vmem, size = 0x12000, scoped, tag = 'internal scratch']
  %s0 = inlined_call_operand.vmem [shape: f32[16,32], index: 0, kind: input, shape index: {}]
  %s1 = inlined_call_operand.vmem [shape: f32[32,256], index: 1, kind: input, shape index: {}]
  %s2 = inlined_call_operand.vmem [shape: f32[128,32], index: 2, kind: input, shape index: {}]
  %s3 = inlined_call_operand.hbm [shape: f32[16,32], index: 3, kind: output, shape index: {}]
  %s4 = sld [smem:[#allocation0]]
  $region45: #{tpu_custom_call.1} parent=0
    _
  %s6 = ssub.s32 1, %s4
  %s7 = scalar_select 0, %s6, %s4
  $region1: #{tpu_custom_call.1} parent=0
    #allocation2 [shape = 'u8[8192]{0}', space=vmem, size = 0x2000, scoped, tag = 'output window, operand 0']
    #allocation3 [shape = 's32[2]{0}', space=sflag, size = 0x8, scoped, tag = 'scoped memory for tpu_custom_call.1']
    %8 = vsyncpa [#allocation3], 0
    %s9 = scalar_lea.sflag [#allocation3], 1
    %10 = vsyncpa %s9, 0
    loop: start=0, step=1, limit=4
    $region2: #{tpu_custom_call.1} parent=1 // loop_pre_header
      _
    $region3: #{tpu_custom_call.1} parent=1 // loop_header
      %s12 = sphi 0, %s16
      %p13 = scmp.ge.s32.totalorder %s12, 4
      %s22 = sphi 0, %s24
      %s25 = sphi 0, %s22
      %s26 = sphi 0, %s25
      %s42 = sphi 0, %s26
      %s46 = sphi 0, %s46
      %s48 = sphi 0, %s46
      %s49 = sphi 0, %s48
      %s63 = sphi 0, %s49
      %s67 = sphi 0, %s67
      %s69 = sphi 0, %s67
      %s70 = sphi 0, %s69
      %s84 = sphi 0, %s70
      %s90 = sphi 0, %s92
      %s93 = sphi 0, %s90
      %s94 = sphi 0, %s93
      %s110 = sphi 0, %s94
    $region4: #{tpu_custom_call.1} parent=1 // loop_header_branch
      %15 = sbr.rel (%p13) target = $region8
    $region5: #{tpu_custom_call.1} parent=1 // loop_body
      %s17 = ssub.s32 %s12, 1
      %s18 = ssub.s32 %s12, 2
      %s19 = sadd.s32 %s12, 1
      %s20 = ssub.s32 %s12, %s19
      %p21 = scmp.eq.s32.totalorder %s20, 0
      %s23 = sadd.s32 %s22, 1
      %s24 = scalar_select %p21, %s22, %s23
      %p27 = pneg %p21
      %p28 = scmp.eq.s32.totalorder %s12, 1
      %p29 = por %p27, %p28
      %p30 = scmp.ne.s32.totalorder %s22, %s25
      %p31 = scmp.eq.s32.totalorder %s12, 0
      %p32 = por %p30, %p31
      %p33 = scmp.ne.s32.totalorder %s22, %s25
      %p34 = scmp.eq.s32.totalorder %s17, 1
      %p35 = por %p33, %p34
      %p36 = scmp.ne.s32.totalorder %s25, %s26
      %p37 = scmp.eq.s32.totalorder %s17, 0
      %p38 = por %p36, %p37
      %p39 = scmp.ne.s32.totalorder %s25, %s26
      %p40 = scmp.eq.s32.totalorder %s18, 1
      %p41 = por %p39, %p40
      %p43 = scmp.ne.s32.totalorder %s26, %s42
      %p44 = scmp.eq.s32.totalorder %s18, 0
      %p45 = por %p43, %p44
      %s47 = sadd.s32 %s46, 1
      %p50 = scmp.eq.s32.totalorder %s12, 1
      %p51 = scmp.ne.s32.totalorder %s46, %s48
      %p52 = scmp.eq.s32.totalorder %s12, 0
      %p53 = por %p51, %p52
      %p54 = scmp.ne.s32.totalorder %s46, %s48
      %p55 = scmp.eq.s32.totalorder %s17, 1
      %p56 = por %p54, %p55
      %p57 = scmp.ne.s32.totalorder %s48, %s49
      %p58 = scmp.eq.s32.totalorder %s17, 0
      %p59 = por %p57, %p58
      %p60 = scmp.ne.s32.totalorder %s48, %s49
      %p61 = scmp.eq.s32.totalorder %s18, 1
      %p62 = por %p60, %p61
      %p64 = scmp.ne.s32.totalorder %s49, %s63
      %p65 = scmp.eq.s32.totalorder %s18, 0
      %p66 = por %p64, %p65
      %s68 = sadd.s32 %s67, 1
      %p71 = scmp.eq.s32.totalorder %s12, 1
      %p72 = scmp.ne.s32.totalorder %s67, %s69
      %p73 = scmp.eq.s32.totalorder %s12, 0
      %p74 = por %p72, %p73
      %p75 = scmp.ne.s32.totalorder %s67, %s69
      %p76 = scmp.eq.s32.totalorder %s17, 1
      %p77 = por %p75, %p76
      %p78 = scmp.ne.s32.totalorder %s69, %s70
      %p79 = scmp.eq.s32.totalorder %s17, 0
      %p80 = por %p78, %p79
      %p81 = scmp.ne.s32.totalorder %s69, %s70
      %p82 = scmp.eq.s32.totalorder %s18, 1
      %p83 = por %p81, %p82
      %p85 = scmp.ne.s32.totalorder %s70, %s84
      %p86 = scmp.eq.s32.totalorder %s18, 0
      %p87 = por %p85, %p86
      %s88 = ssub.s32 %s12, %s19
      %p89 = scmp.eq.s32.totalorder %s88, 0
      %s91 = sadd.s32 %s90, 1
      %s92 = scalar_select %p89, %s90, %s91
      %p95 = pneg %p89
      %p96 = scmp.eq.s32.totalorder %s12, 1
      %p97 = por %p95, %p96
      %p98 = scmp.ne.s32.totalorder %s90, %s93
      %p99 = scmp.eq.s32.totalorder %s12, 0
      %p100 = por %p98, %p99
      %p101 = scmp.ne.s32.totalorder %s90, %s93
      %p102 = scmp.eq.s32.totalorder %s17, 1
      %p103 = por %p101, %p102
      %p104 = scmp.ne.s32.totalorder %s93, %s94
      %p105 = scmp.eq.s32.totalorder %s17, 0
      %p106 = por %p104, %p105
      %p107 = scmp.ne.s32.totalorder %s93, %s94
      %p108 = scmp.eq.s32.totalorder %s18, 1
      %p109 = por %p107, %p108
      %p111 = scmp.ne.s32.totalorder %s94, %s110
      %p112 = scmp.eq.s32.totalorder %s18, 0
      %p113 = por %p111, %p112
      %p114 = scmp.le.s32.totalorder 1, %s12
      %p115 = scmp.lt.s32.totalorder %s12, 3
      %p116 = pnand %p114, %p115
      %p117 = pneg %p116
      // Predicated region
      $region9: #{tpu_custom_call.1} parent=5 // pred_check
        _
      $region10: #{tpu_custom_call.1} parent=5 // pred_check_branch
        %119 = sbr.rel (%p116) target = $region12
      $region11: #{tpu_custom_call.1} parent=5 // pred_region
        %s120 = ssub.s32 %s12, 1
        // Predicated region
        $region13: #{tpu_custom_call.1} parent=11 // pred_check
          %p121 = pneg %p59
        $region14: #{tpu_custom_call.1} parent=11 // pred_check_branch
          %123 = sbr.rel (%p121) target = $region16
        $region15: #{tpu_custom_call.1} parent=11 // pred_region
          _
        $region16: #{tpu_custom_call.1} parent=11 // pred_fallthru
          _
        // Predicated region
        $region17: #{tpu_custom_call.1} parent=11 // pred_check
          %p124 = pneg %p80
        $region18: #{tpu_custom_call.1} parent=11 // pred_check_branch
          %126 = sbr.rel (%p124) target = $region20
        $region19: #{tpu_custom_call.1} parent=11 // pred_region
          _
        $region20: #{tpu_custom_call.1} parent=11 // pred_fallthru
          _
      $region12: #{tpu_custom_call.1} parent=5 // pred_fallthru
        _
      %p127 = scmp.lt.s32.totalorder %s12, 2
      // Predicated region
      $region21: #{tpu_custom_call.1} parent=5 // pred_check
        %p128 = pneg %p127
      $region22: #{tpu_custom_call.1} parent=5 // pred_check_branch
        %130 = sbr.rel (%p128) target = $region24
      $region23: #{tpu_custom_call.1} parent=5 // pred_region
        // Predicated region
        $region25: #{tpu_custom_call.1} parent=23 // pred_check
          %p131 = pneg %p32
        $region26: #{tpu_custom_call.1} parent=23 // pred_check_branch
          %133 = sbr.rel (%p131) target = $region28
        $region27: #{tpu_custom_call.1} parent=23 // pred_region
          %p134 = scmp.lt.s32.totalorder %s12, 1
          %s135 = scalar_select %p134, %s12, 1
          %s136 = smul.addr %s135, 8
          %s137 = scalar_lea.vmem %s0, %s136
        $region28: #{tpu_custom_call.1} parent=23 // pred_fallthru
          _
      $region24: #{tpu_custom_call.1} parent=5 // pred_fallthru
        _
      %p138 = scmp.le.s32.totalorder 1, %s12
      %p139 = scmp.lt.s32.totalorder %s12, 3
      %p140 = pnand %p138, %p139
      %p141 = pneg %p140
      // Predicated region
      $region29: #{tpu_custom_call.1} parent=5 // pred_check
        _
      $region30: #{tpu_custom_call.1} parent=5 // pred_check_branch
        %143 = sbr.rel (%p140) target = $region32
      $region31: #{tpu_custom_call.1} parent=5 // pred_region
        %s144 = ssub.s32 %s12, 1
        %p145 = scmp.lt.s32.totalorder %s17, 1
        %s146 = scalar_select %p145, %s17, 1
        %s147 = smul.addr %s146, 8
        %s148 = scalar_lea.vmem %s0, %s147
        %p149 = pneg %p38
        %p150 = pneg %p35
        %p151 = pneg %p59
        %p152 = pneg %p56
        %p153 = pneg %p80
        %p154 = pneg %p77
        %p155 = pneg %p106
        %p156 = pneg %p103
        %s157 = sand.u32 %s93, 1
        %s158 = scalar_lea.sflag [#allocation3], %s157
        %s159 = sand.u32 %s93, 1
        %s160 = smul.addr %s159, 8
        %s161 = scalar_lea.vmem [#allocation2], %s160
        %p162 = scmp.lt.s32.totalorder %s17, 1
        %s163 = scalar_select %p162, %s17, 1
        %s164 = smul.addr %s163, 8
        %s165 = scalar_lea.vmem %s0, %s164
        %v166 = vld [vmem:[%s165] sm:$0xff]
        %v167 = vld [vmem:[%s1] sm:$0xff]
        %v168 = vld [vmem:[%s1 + $0x8] sm:$0xff]
        %v169 = vld [vmem:[%s1 + $0x10] sm:$0xff]
        %v170 = vld [vmem:[%s1 + $0x18] sm:$0xff]
        %v171 = vld [vmem:[%s1 + $0x20] sm:$0xff]
        %v172 = vld [vmem:[%s1 + $0x28] sm:$0xff]
        %v173 = vld [vmem:[%s1 + $0x30] sm:$0xff]
        %v174 = vld [vmem:[%s1 + $0x38] sm:$0xff]
        %vm175 = vcmask 261120
        %v177 = vsel %vm175, %v166, 0
        %179 = vmatprep.subr.mxu0 0.0
        %180 = vmatpush1.msra.mxu0 0.0
        %181 = vmatprep.subr.mxu0 0.0
        %182 = vmatpush1.msra.mxu0 0.0
        %183 = vmatprep.subr.mxu0 0.0
        %184 = vmatpush1.msra.mxu0 0.0
        %185 = vmatprep.subr.mxu0 0.0
        %186 = vmatpush1.msra.mxu0 0.0
        %187 = vmatprep.subr.mxu0 0.0
        %188 = vmatpush1.msra.mxu0 0.0
        %189 = vmatprep.subr.mxu0 0.0
        %190 = vmatpush1.msra.mxu0 0.0
        %191 = vmatprep.subr.mxu0 0.0
        %192 = vmatpush1.msra.mxu0 0.0
        %193 = vmatprep.subr.mxu0 0.0
        %194 = vmatpush1.msra.mxu0 0.0
        %195 = vmatprep.subr.mxu0 0.0
        %196 = vmatpush1.msra.mxu0 0.0
        %197 = vmatprep.subr.mxu0 0.0
        %198 = vmatpush1.msra.mxu0 0.0
        %199 = vmatprep.subr.mxu0 0.0
        %200 = vmatpush1.msra.mxu0 0.0
        %201 = vmatprep.subr.mxu0 0.0
        %202 = vmatpush1.msra.mxu0 0.0
        %203 = vmatprep.subr.mxu0 %v174
        %204 = vmatpush1.msra.mxu0 %v173
        %205 = vmatprep.subr.mxu0 %v172
        %206 = vmatpush1.msra.mxu0 %v171
        %207 = vmatprep.subr.mxu0 %v170
        %208 = vmatpush1.msra.mxu0 %v169
        %209 = vmatprep.subr.mxu0 %v168
        %210 = vmatpush1.msra.mxu0 %v167
        %211 = vmatprep.subr.mxu0 0.0
        %212 = vmatpush2.msra.mxu0 0.0
        %213 = vmatprep.subr.mxu0 0.0
        %214 = vmatpush2.msra.mxu0 0.0
        %215 = vmatprep.subr.mxu0 0.0
        %216 = vmatpush2.msra.mxu0 0.0
        %217 = vmatprep.subr.mxu0 0.0
        %218 = vmatpush2.msra.mxu0 0.0
        %219 = vmatprep.subr.mxu0 0.0
        %220 = vmatpush2.msra.mxu0 0.0
        %221 = vmatprep.subr.mxu0 0.0
        %222 = vmatpush2.msra.mxu0 0.0
        %223 = vmatprep.subr.mxu0 0.0
        %224 = vmatpush2.msra.mxu0 0.0
        %225 = vmatprep.subr.mxu0 0.0
        %226 = vmatpush2.msra.mxu0 0.0
        %227 = vmatprep.subr.mxu0 0.0
        %228 = vmatpush2.msra.mxu0 0.0
        %229 = vmatprep.subr.mxu0 0.0
        %230 = vmatpush2.msra.mxu0 0.0
        %231 = vmatprep.subr.mxu0 0.0
        %232 = vmatpush2.msra.mxu0 0.0
        %233 = vmatprep.subr.mxu0 0.0
        %234 = vmatpush2.msra.mxu0 0.0
        %235 = vmatprep.subr.mxu0 0.0
        %236 = vmatpush2.msra.mxu0 0.0
        %237 = vmatprep.subr.mxu0 0.0
        %238 = vmatpush2.msra.mxu0 0.0
        %239 = vmatprep.subr.mxu0 0.0
        %240 = vmatpush2.msra.mxu0 0.0
        %241 = vmatprep.subr.mxu0 0.0
        %242 = vmatpush2.msra.mxu0 0.0
        %243 = vmatprep.mubr.f32.mxu0 0.0
        %244 = vmatmul.mubr.f32.gmra.mxu0 %v177
        %v245 = vpop.f32.mrf.mxu0
        %v246 = vadd.f32 0.0, %v245
        %v247 = vpop.f32.mrf.mxu0
        %v248 = vadd.f32 0.0, %v247
        %249 = vdwg.mxu0
        %v250 = vxor.u32 %v246, 2147483648
        %v251 = vmul.f32 %v250, 1.442695
        %v252 = vpow.pop %v251
        %v253 = vadd.f32 %v252, 1.0
        %v254 = vrcp.pop %v253
        %v255 = vmul.f32 1.0, %v254
        %v256 = vmul.f32 %v246, %v255
        %v257 = vmul.f32 %v256, %v248
        %v258 = vld [vmem:[%s2] sm:$0xff]
        %v259 = vld [vmem:[%s2 + $0x8] sm:$0xff]
        %v260 = vld [vmem:[%s2 + $0x10] sm:$0xff]
        %v261 = vld [vmem:[%s2 + $0x18] sm:$0xff]
        %v262 = vld [vmem:[%s2 + $0x20] sm:$0xff]
        %v263 = vld [vmem:[%s2 + $0x28] sm:$0xff]
        %v264 = vld [vmem:[%s2 + $0x30] sm:$0xff]
        %v265 = vld [vmem:[%s2 + $0x38] sm:$0xff]
        %v266 = vld [vmem:[%s2 + $0x40] sm:$0xff]
        %v267 = vld [vmem:[%s2 + $0x48] sm:$0xff]
        %v268 = vld [vmem:[%s2 + $0x50] sm:$0xff]
        %v269 = vld [vmem:[%s2 + $0x58] sm:$0xff]
        %v270 = vld [vmem:[%s2 + $0x60] sm:$0xff]
        %v271 = vld [vmem:[%s2 + $0x68] sm:$0xff]
        %v272 = vld [vmem:[%s2 + $0x70] sm:$0xff]
        %v273 = vld [vmem:[%s2 + $0x78] sm:$0xff]
        %274 = vmatprep.subr.mxu0 0.0
        %275 = vmatpush1.msra.mxu0 %v273
        %276 = vmatprep.subr.mxu0 0.0
        %277 = vmatpush1.msra.mxu0 %v272
        %278 = vmatprep.subr.mxu0 0.0
        %279 = vmatpush1.msra.mxu0 %v271
        %280 = vmatprep.subr.mxu0 0.0
        %281 = vmatpush1.msra.mxu0 %v270
        %282 = vmatprep.subr.mxu0 0.0
        %283 = vmatpush1.msra.mxu0 %v269
        %284 = vmatprep.subr.mxu0 0.0
        %285 = vmatpush1.msra.mxu0 %v268
        %286 = vmatprep.subr.mxu0 0.0
        %287 = vmatpush1.msra.mxu0 %v267
        %288 = vmatprep.subr.mxu0 0.0
        %289 = vmatpush1.msra.mxu0 %v266
        %290 = vmatprep.subr.mxu0 0.0
        %291 = vmatpush1.msra.mxu0 %v265
        %292 = vmatprep.subr.mxu0 0.0
        %293 = vmatpush1.msra.mxu0 %v264
        %294 = vmatprep.subr.mxu0 0.0
        %295 = vmatpush1.msra.mxu0 %v263
        %296 = vmatprep.subr.mxu0 0.0
        %297 = vmatpush1.msra.mxu0 %v262
        %298 = vmatprep.subr.mxu0 0.0
        %299 = vmatpush1.msra.mxu0 %v261
        %300 = vmatprep.subr.mxu0 0.0
        %301 = vmatpush1.msra.mxu0 %v260
        %302 = vmatprep.subr.mxu0 0.0
        %303 = vmatpush1.msra.mxu0 %v259
        %304 = vmatprep.subr.mxu0 0.0
        %305 = vmatpush1.msra.mxu0 %v258
        %306 = vmatprep.subr.mxu0 0.0
        %307 = vmatpush2.msra.mxu0 0.0
        %308 = vmatprep.subr.mxu0 0.0
        %309 = vmatpush2.msra.mxu0 0.0
        %310 = vmatprep.subr.mxu0 0.0
        %311 = vmatpush2.msra.mxu0 0.0
        %312 = vmatprep.subr.mxu0 0.0
        %313 = vmatpush2.msra.mxu0 0.0
        %314 = vmatprep.subr.mxu0 0.0
        %315 = vmatpush2.msra.mxu0 0.0
        %316 = vmatprep.subr.mxu0 0.0
        %317 = vmatpush2.msra.mxu0 0.0
        %318 = vmatprep.subr.mxu0 0.0
        %319 = vmatpush2.msra.mxu0 0.0
        %320 = vmatprep.subr.mxu0 0.0
        %321 = vmatpush2.msra.mxu0 0.0
        %322 = vmatprep.subr.mxu0 0.0
        %323 = vmatpush2.msra.mxu0 0.0
        %324 = vmatprep.subr.mxu0 0.0
        %325 = vmatpush2.msra.mxu0 0.0
        %326 = vmatprep.subr.mxu0 0.0
        %327 = vmatpush2.msra.mxu0 0.0
        %328 = vmatprep.subr.mxu0 0.0
        %329 = vmatpush2.msra.mxu0 0.0
        %330 = vmatprep.subr.mxu0 0.0
        %331 = vmatpush2.msra.mxu0 0.0
        %332 = vmatprep.subr.mxu0 0.0
        %333 = vmatpush2.msra.mxu0 0.0
        %334 = vmatprep.subr.mxu0 0.0
        %335 = vmatpush2.msra.mxu0 0.0
        %336 = vmatprep.subr.mxu0 0.0
        %337 = vmatpush2.msra.mxu0 0.0
        %338 = vmatprep.mubr.f32.mxu0 0.0
        %339 = vmatmul.mubr.f32.gmra.mxu0 %v257
        %v340 = vpop.f32.mrf.mxu0
        %v341 = vadd.f32 0.0, %v340
        %v342 = vpop.f32.mrf.mxu0
        %343 = vdwg.mxu0
        %344 = vst.msk [vmem:[%s161] sm:$0xff] %vm175, %v341
        %s345 = sand.u32 %s93, 1
        %s346 = scalar_lea.sflag [#allocation3], %s345
        %s347 = sand.u32 %s93, 1
        %s348 = smul.addr %s347, 8
        %s349 = scalar_lea.vmem [#allocation2], %s348
        // Predicated region
        $region33: #{tpu_custom_call.1} parent=31 // pred_check
          %p350 = pneg %p103
        $region34: #{tpu_custom_call.1} parent=31 // pred_check_branch
          %352 = sbr.rel (%p350) target = $region36
        $region35: #{tpu_custom_call.1} parent=31 // pred_region
          %s354 = ssub.s32 128, 128
          %355 = vsyncadd %s346, %s354
          %s356 = smul.addr %s17, 128
          %s357 = scalar_lea.hbm %s3, %s356
          %s359 = sshll.u32 %s349, 4
          %s360 = int_to_ptr.vmem [resolvable:$true] %s359
          %362 = dma.vmem_to_hbm [thread:$0]  %s360, 128, %s357, %s346
        $region36: #{tpu_custom_call.1} parent=31 // pred_fallthru
          _
      $region32: #{tpu_custom_call.1} parent=5 // pred_fallthru
        _
      %p363 = scmp.le.s32.totalorder 2, %s12
      // Predicated region
      $region37: #{tpu_custom_call.1} parent=5 // pred_check
        %p364 = pneg %p363
      $region38: #{tpu_custom_call.1} parent=5 // pred_check_branch
        %366 = sbr.rel (%p364) target = $region40
      $region39: #{tpu_custom_call.1} parent=5 // pred_region
        %s367 = ssub.s32 %s12, 2
        // Predicated region
        $region41: #{tpu_custom_call.1} parent=39 // pred_check
          %p368 = pneg %p109
        $region42: #{tpu_custom_call.1} parent=39 // pred_check_branch
          %370 = sbr.rel (%p368) target = $region44
        $region43: #{tpu_custom_call.1} parent=39 // pred_region
          %s371 = sand.u32 %s94, 1
          %s372 = scalar_lea.sflag [#allocation3], %s371
          %s373 = sand.u32 %s94, 1
          %s374 = smul.addr %s373, 8
          %s375 = scalar_lea.vmem [#allocation2], %s374
          %376 = dma.done %s372, 128
        $region44: #{tpu_custom_call.1} parent=39 // pred_fallthru
          _
      $region40: #{tpu_custom_call.1} parent=5 // pred_fallthru
        _
    $region6: #{tpu_custom_call.1} parent=1 // loop_footer
      %s16 = sadd.s32 1, %s12
    $region7: #{tpu_custom_call.1} parent=1 // loop_footer_branch
      %11 = sbr.rel target = $region3
    $region8: #{tpu_custom_call.1} parent=1 // loop_exit
      _
    %377 = vsyncpa [#allocation3], 1
    %s378 = scalar_lea.sflag [#allocation3], 1
    %379 = vsyncpa %s378, 1

</llo_original>
